<compile_context>
chip_gen: v7x
topology: tpu7x:2x2x1
jax: 0.10.0
libtpu: 0.0.40
codegen_flags: <defaults>
</compile_context>

<pallas_src>
import functools

import jax
import jax.numpy as jnp
from jax.experimental import pallas as pl
from jax.experimental.pallas import tpu as pltpu

_LANE = 128      # lane width of a vreg
_SUBLANE = 8     # sublane depth of a vreg (f32)


def _round_up(n, m):
    return ((n + m - 1) // m) * m


# ----------------------------------------------------------------------------
# Kernel
# ----------------------------------------------------------------------------
def actor_kernel(x_ref, p_ref, out_ref, *, input_size, hidden_size, output_size,
                 o_w1, o_b1, o_w2, o_b2, o_w3, o_b3):
    """One batch tile of the 3-layer MLP.

    p_ref holds every parameter in one packed buffer (true column width);
    all offsets are static Python ints, row offsets are 8-aligned, so the
    slices below are cheap static views.
    """
    x = x_ref[...]

    # Layer 1: linear + ReLU
    w1 = p_ref[o_w1:o_w1 + input_size, 0:hidden_size]
    b1 = p_ref[o_b1:o_b1 + 1, 0:hidden_size]
    h = jnp.dot(x, w1, preferred_element_type=jnp.float32)
    h = jnp.maximum(h + b1, 0.0)

    # Layer 2: linear + ReLU
    w2 = p_ref[o_w2:o_w2 + hidden_size, 0:hidden_size]
    b2 = p_ref[o_b2:o_b2 + 1, 0:hidden_size]
    h = jnp.dot(h, w2, preferred_element_type=jnp.float32)
    h = jnp.maximum(h + b2, 0.0)

    # Layer 3: linear + tanh
    w3 = p_ref[o_w3:o_w3 + hidden_size, 0:output_size]
    b3 = p_ref[o_b3:o_b3 + 1, 0:output_size]
    h = jnp.dot(h, w3, preferred_element_type=jnp.float32)
    out_ref[...] = jnp.tanh(h + b3).astype(out_ref.dtype)


# ----------------------------------------------------------------------------
# Parameter packing (done once, outside the kernel)
# ----------------------------------------------------------------------------
def pack_actor_params(params):
    """Pack W1,b1,W2,b2,W3,b3 into one (rows, max(hidden,output)) f32 buffer.

    Row layout (all block starts 8-sublane aligned):
      [0, input_size)        : W1  (cols [0, hidden))
      [o_b1, o_b1+8)         : b1  in row o_b1
      [o_w2, o_w2+hidden)    : W2  (cols [0, hidden))
      [o_b2, o_b2+8)         : b2
      [o_w3, o_w3+hidden)    : W3  (cols [0, output))
      [o_b3, o_b3+8)         : b3
    Columns are the TRUE widths (no 128-lane padding) so the one-shot
    parameter DMA moves only real bytes.
    """
    w1, b1 = params["w1"], params["b1"]
    w2, b2 = params["w2"], params["b2"]
    w3, b3 = params["w3"], params["b3"]
    input_size, hidden_size = w1.shape
    output_size = w3.shape[1]

    cols = max(hidden_size, output_size)

    o_w1 = 0
    o_b1 = _round_up(input_size, _SUBLANE)
    o_w2 = o_b1 + _SUBLANE
    o_b2 = o_w2 + _round_up(hidden_size, _SUBLANE)
    o_w3 = o_b2 + _SUBLANE
    o_b3 = o_w3 + _round_up(hidden_size, _SUBLANE)
    rows = o_b3 + _SUBLANE

    packed = jnp.zeros((rows, cols), jnp.float32)
    packed = packed.at[o_w1:o_w1 + input_size, :hidden_size].set(w1)
    packed = packed.at[o_b1, :hidden_size].set(jnp.reshape(b1, (-1,)))
    packed = packed.at[o_w2:o_w2 + hidden_size, :hidden_size].set(w2)
    packed = packed.at[o_b2, :hidden_size].set(jnp.reshape(b2, (-1,)))
    packed = packed.at[o_w3:o_w3 + hidden_size, :output_size].set(w3)
    packed = packed.at[o_b3, :output_size].set(jnp.reshape(b3, (-1,)))

    dims = dict(
        input_size=input_size, hidden_size=hidden_size, output_size=output_size,
        rows=rows, cols=cols,
        o_w1=o_w1, o_b1=o_b1, o_w2=o_w2, o_b2=o_b2, o_w3=o_w3, o_b3=o_b3,
    )
    return packed, dims


# ----------------------------------------------------------------------------
# Forward wrapper
# ----------------------------------------------------------------------------
def make_actor_forward(dims, *, max_tile_b=512):
    input_size = dims["input_size"]
    hidden_size = dims["hidden_size"]
    output_size = dims["output_size"]
    rows, cols = dims["rows"], dims["cols"]

    kernel = functools.partial(
        actor_kernel,
        input_size=input_size, hidden_size=hidden_size, output_size=output_size,
        o_w1=dims["o_w1"], o_b1=dims["o_b1"], o_w2=dims["o_w2"],
        o_b2=dims["o_b2"], o_w3=dims["o_w3"], o_b3=dims["o_b3"])

    def forward(x, packed_params):
        batch = x.shape[0]
        x = x.astype(jnp.float32)

        # Batch tile: biggest HBM-roofline-friendly tile that covers the
        # batch, multiple of 8 sublanes.  The ragged last tile is masked by
        # Pallas (no wrapper pad copy).
        tile_b = min(max_tile_b, _round_up(batch, _SUBLANE))
        # If the whole batch fits one tile but has >= 2 sublane-tiles, split
        # into two grid steps so v7x's two TensorCores both get work
        # ("parallel" axis); costs only ~0.35 us on single-TC chips.
        if batch >= 2 * _SUBLANE and pl.cdiv(batch, tile_b) < 2:
            tile_b = _round_up(pl.cdiv(batch, 2), _SUBLANE)

        grid = (pl.cdiv(batch, tile_b),)

        # Explicit scoped-VMEM limit: resident params (double-buffered upper
        # bound) + double-buffered activation tiles, generous headroom,
        # clamped to v7x's 64 MiB physical VMEM.
        vmem_need = (2 * rows * cols
                     + 2 * tile_b * (input_size + output_size)
                     + 2 * tile_b * hidden_size) * 4
        vmem_limit = int(min(64 * 1024 * 1024,
                             max(4 * vmem_need, 16 * 1024 * 1024)))

        y = pl.pallas_call(
            kernel,
            out_shape=jax.ShapeDtypeStruct((batch, output_size), jnp.float32),
            grid_spec=pltpu.PrefetchScalarGridSpec(
                num_scalar_prefetch=0,
                grid=grid,
                in_specs=[
                    # Activations: true-width block (last dim == full array
                    # dim, so exempt from the 128-lane rule), one tile per
                    # grid step, double-buffered DMA.
                    pl.BlockSpec((tile_b, input_size), lambda i: (i, 0)),
                    # Packed params: constant index_map -> fetched once,
                    # VMEM-resident across all batch tiles.
                    pl.BlockSpec((rows, cols), lambda i: (0, 0)),
                ],
                # True-width output: writes only real bytes, no post-slice.
                out_specs=pl.BlockSpec((tile_b, output_size), lambda i: (i, 0)),
            ),
            compiler_params=pltpu.CompilerParams(
                dimension_semantics=("parallel",),
                vmem_limit_bytes=vmem_limit),
        )(x, packed_params)

        return y

    return forward


# ----------------------------------------------------------------------------
# Init + reference
# ----------------------------------------------------------------------------
def init_actor_params(key, input_size, hidden_size, output_size):
    """nn.Linear-style init U(-1/sqrt(fan_in), 1/sqrt(fan_in)).

    Weights stored transposed: (in_features, out_features); biases (out,).
    """
    ks = jax.random.split(key, 6)

    def lin(kw, kb, fan_in, fan_out):
        bound = 1.0 / jnp.sqrt(fan_in)
        w = jax.random.uniform(kw, (fan_in, fan_out), jnp.float32, -bound, bound)
        b = jax.random.uniform(kb, (fan_out,), jnp.float32, -bound, bound)
        return w, b

    w1, b1 = lin(ks[0], ks[1], input_size, hidden_size)
    w2, b2 = lin(ks[2], ks[3], hidden_size, hidden_size)
    w3, b3 = lin(ks[4], ks[5], hidden_size, output_size)
    return {"w1": w1, "b1": b1, "w2": w2, "b2": b2, "w3": w3, "b3": b3}


def actor_reference(x, params):
    """Pure-JAX reference for correctness check."""
    h = jnp.maximum(x @ params["w1"] + params["b1"], 0.0)
    h = jnp.maximum(h @ params["w2"] + params["b2"], 0.0)
    return jnp.tanh(h @ params["w3"] + params["b3"])


if __name__ == "__main__":
    # Small shapes consistent with the module: state-vector MLP.
    batch, input_size, hidden_size, output_size = 2, 16, 32, 8

    key = jax.random.PRNGKey(0)
    k_params, k_x = jax.random.split(key)

    params = init_actor_params(k_params, input_size, hidden_size, output_size)
    x = jax.random.normal(k_x, (batch, input_size), jnp.float32)

    packed, dims = pack_actor_params(params)
    actor_forward = make_actor_forward(dims)

    out = actor_forward(x, packed)
    out = jax.block_until_ready(out)

    ref = actor_reference(x, params)
    assert out.shape == (batch, output_size)
    assert jnp.allclose(out, ref, atol=1e-5, rtol=1e-5), "mismatch vs reference"

    print("KERNEL_OK")
</pallas_src>

<mosaic_0001>
module attributes {stable_mosaic.version = 11 : i64} {
  func.func @actor_kernel(%arg0: i32, %arg1: memref<8x16xf32, #tpu.memory_space<vmem>>, %arg2: memref<104x32xf32, #tpu.memory_space<vmem>>, %arg3: memref<8x8xf32, #tpu.memory_space<vmem>>) attributes {dimension_semantics = [#tpu.dimension_semantics<parallel>], iteration_bounds = array<i64: 1>, scalar_prefetch = 0 : i64, scratch_operands = 0 : i64, tpu.core_type = #tpu.core_type<tc>, window_params = [{transform_indices = @transform_0, window_bounds = array<i64: 8, 16>}, {pipeline_mode = #tpu.pipeline_mode<synchronous>, transform_indices = @transform_1, window_bounds = array<i64: 104, 32>}, {transform_indices = @transform_2, window_bounds = array<i64: 8, 8>}]} {
    %c0 = arith.constant 0 : index
    %c0_0 = arith.constant 0 : index
    %0 = vector.load %arg1[%c0, %c0_0] : memref<8x16xf32, #tpu.memory_space<vmem>>, vector<8x16xf32>
    %c0_1 = arith.constant 0 : index
    %c0_2 = arith.constant 0 : index
    %1 = vector.load %arg2[%c0_1, %c0_2] : memref<104x32xf32, #tpu.memory_space<vmem>>, vector<16x32xf32>
    %c16 = arith.constant 16 : index
    %c0_3 = arith.constant 0 : index
    %2 = vector.load %arg2[%c16, %c0_3] : memref<104x32xf32, #tpu.memory_space<vmem>>, vector<1x32xf32>
    %cst = arith.constant dense<0.000000e+00> : vector<8x32xf32>
    %3 = tpu.matmul %0, %1, %cst {dimension_numbers = #tpu.dot_dimension_numbers<[1], [0], [0], [1], [0, 0, 1, 1], [], []>} : vector<8x16xf32>, vector<16x32xf32>, vector<8x32xf32> -> vector<8x32xf32>
    %4 = vector.broadcast %2 : vector<1x32xf32> to vector<8x32xf32>
    %5 = arith.addf %3, %4 : vector<8x32xf32>
    %cst_4 = arith.constant 0.000000e+00 : f32
    %6 = vector.broadcast %cst_4 : f32 to vector<8x32xf32>
    %7 = arith.maximumf %5, %6 : vector<8x32xf32>
    %c24 = arith.constant 24 : index
    %c0_5 = arith.constant 0 : index
    %8 = vector.load %arg2[%c24, %c0_5] : memref<104x32xf32, #tpu.memory_space<vmem>>, vector<32x32xf32>
    %c56 = arith.constant 56 : index
    %c0_6 = arith.constant 0 : index
    %9 = vector.load %arg2[%c56, %c0_6] : memref<104x32xf32, #tpu.memory_space<vmem>>, vector<1x32xf32>
    %cst_7 = arith.constant dense<0.000000e+00> : vector<8x32xf32>
    %10 = tpu.matmul %7, %8, %cst_7 {dimension_numbers = #tpu.dot_dimension_numbers<[1], [0], [0], [1], [0, 0, 1, 1], [], []>} : vector<8x32xf32>, vector<32x32xf32>, vector<8x32xf32> -> vector<8x32xf32>
    %11 = vector.broadcast %9 : vector<1x32xf32> to vector<8x32xf32>
    %12 = arith.addf %10, %11 : vector<8x32xf32>
    %cst_8 = arith.constant 0.000000e+00 : f32
    %13 = vector.broadcast %cst_8 : f32 to vector<8x32xf32>
    %14 = arith.maximumf %12, %13 : vector<8x32xf32>
    %c64 = arith.constant 64 : index
    %c0_9 = arith.constant 0 : index
    %15 = vector.load %arg2[%c64, %c0_9] : memref<104x32xf32, #tpu.memory_space<vmem>>, vector<32x8xf32>
    %c96 = arith.constant 96 : index
    %c0_10 = arith.constant 0 : index
    %16 = vector.load %arg2[%c96, %c0_10] : memref<104x32xf32, #tpu.memory_space<vmem>>, vector<1x8xf32>
    %cst_11 = arith.constant dense<0.000000e+00> : vector<8x8xf32>
    %17 = tpu.matmul %14, %15, %cst_11 {dimension_numbers = #tpu.dot_dimension_numbers<[1], [0], [0], [1], [0, 0, 1, 1], [], []>} : vector<8x32xf32>, vector<32x8xf32>, vector<8x8xf32> -> vector<8x8xf32>
    %18 = vector.broadcast %16 : vector<1x8xf32> to vector<8x8xf32>
    %19 = arith.addf %17, %18 : vector<8x8xf32>
    %20 = math.tanh %19 : vector<8x8xf32>
    %c0_12 = arith.constant 0 : index
    %c0_13 = arith.constant 0 : index
    %21 = vector.load %arg3[%c0_12, %c0_13] : memref<8x8xf32, #tpu.memory_space<vmem>>, vector<8x8xf32>
    tpu.vector_store %arg3[%c0_12, %c0_13], %20 {strides = array<i32>} : memref<8x8xf32, #tpu.memory_space<vmem>>, vector<8x8xf32>,
    return
  }
  func.func @transform_0(%arg0: i32) -> (i32, i32) {
    %c0_i32 = arith.constant 0 : i32
    %c0_i32_0 = arith.constant 0 : i32
    return %arg0, %c0_i32 : i32, i32
  }
  func.func @transform_1(%arg0: i32) -> (i32, i32) {
    %c0_i32 = arith.constant 0 : i32
    %c0_i32_0 = arith.constant 0 : i32
    %c0_i32_1 = arith.constant 0 : i32
    return %c0_i32, %c0_i32_0 : i32, i32
  }
  func.func @transform_2(%arg0: i32) -> (i32, i32) {
    %c0_i32 = arith.constant 0 : i32
    %c0_i32_0 = arith.constant 0 : i32
    return %arg0, %c0_i32 : i32, i32
  }
}

</mosaic_0001>

<llo_original>
// kernel: tpu_custom_call.1
$region0: #{tpu_custom_call.1}
  #allocation0 [shape = 'u32[]', space=smem, size = 0x4, offset = 0x4, fixed_abs, tag = 'smem constant byte address 0x4 - core index']
  #allocation1 [shape = 'u32[144,128]{1,0:T(1,128)}', space=vmem, size = 0x12000, scoped, tag = 'internal scratch']
  %s0 = inlined_call_operand.vmem [shape: f32[2,16], index: 0, kind: input, shape index: {}]
  %s1 = inlined_call_operand.vmem [shape: f32[104,32], index: 1, kind: input, shape index: {}]
  %s2 = inlined_call_operand.hbm [shape: f32[2,8], index: 2, kind: output, shape index: {}]
  %s3 = sld [smem:[#allocation0]]
  $region18: #{tpu_custom_call.1} parent=0
    _
  %s5 = ssub.s32 1, %s3
  %s6 = scalar_select 0, %s5, %s3
  $region1: #{tpu_custom_call.1} parent=0
    #allocation2 [shape = 'u8[4096]{0}', space=vmem, size = 0x1000, scoped, tag = 'output window, operand 0, single buffered']
    #allocation3 [shape = 's32[1]{0}', space=sflag, size = 0x4, scoped, tag = 'scoped memory for tpu_custom_call.1']
    %7 = vsyncpa [#allocation3], 0
    // Predicated region
    $region2: #{tpu_custom_call.1} parent=1 // pred_check
      _
    $region3: #{tpu_custom_call.1} parent=1 // pred_check_branch
      %9 = sbr.rel (0) target = $region5
    $region4: #{tpu_custom_call.1} parent=1 // pred_region
      _
    $region5: #{tpu_custom_call.1} parent=1 // pred_fallthru
      _
    // Predicated region
    $region6: #{tpu_custom_call.1} parent=1 // pred_check
      _
    $region7: #{tpu_custom_call.1} parent=1 // pred_check_branch
      %11 = sbr.rel (0) target = $region9
    $region8: #{tpu_custom_call.1} parent=1 // pred_region
      _
    $region9: #{tpu_custom_call.1} parent=1 // pred_fallthru
      _
    %v12 = vld [vmem:[%s0] sm:$0xff]
    %v13 = vld [vmem:[%s1] sm:$0xff]
    %v14 = vld [vmem:[%s1 + $0x8] sm:$0xff]
    %v15 = vld [vmem:[%s1 + $0x10] sm:$0x1]
    %v16 = vlaneseq
    %v17 = vshrl.u32 %v16, 7
    %v18 = vsub.s32 0, %v17
    %v19 = vrot.slane %v15, %v18
    %vm20 = vcmask 130048
    %v22 = vsel %vm20, %v12, 0
    %24 = vmatprep.subr.mxu0 0.0
    %25 = vmatpush1.msra.mxu0 %v13
    %26 = vmatprep.subr.mxu0 0.0
    %27 = vmatpush1.msra.mxu0 %v14
    %28 = vmatprep.subr.mxu0 0.0
    %29 = vmatpush1.msra.mxu0 0.0
    %30 = vmatprep.subr.mxu0 0.0
    %31 = vmatpush1.msra.mxu0 0.0
    %32 = vmatprep.subr.mxu0 0.0
    %33 = vmatpush1.msra.mxu0 0.0
    %34 = vmatprep.subr.mxu0 0.0
    %35 = vmatpush1.msra.mxu0 0.0
    %36 = vmatprep.subr.mxu0 0.0
    %37 = vmatpush1.msra.mxu0 0.0
    %38 = vmatprep.subr.mxu0 0.0
    %39 = vmatpush1.msra.mxu0 0.0
    %40 = vmatprep.subr.mxu0 0.0
    %41 = vmatpush1.msra.mxu0 0.0
    %42 = vmatprep.subr.mxu0 0.0
    %43 = vmatpush1.msra.mxu0 0.0
    %44 = vmatprep.subr.mxu0 0.0
    %45 = vmatpush1.msra.mxu0 0.0
    %46 = vmatprep.subr.mxu0 0.0
    %47 = vmatpush1.msra.mxu0 0.0
    %48 = vmatprep.subr.mxu0 0.0
    %49 = vmatpush1.msra.mxu0 0.0
    %50 = vmatprep.subr.mxu0 0.0
    %51 = vmatpush1.msra.mxu0 0.0
    %52 = vmatprep.subr.mxu0 0.0
    %53 = vmatpush1.msra.mxu0 0.0
    %54 = vmatprep.subr.mxu0 0.0
    %55 = vmatpush1.msra.mxu0 0.0
    %56 = vmatprep.subr.mxu0 0.0
    %57 = vmatpush1.msra.mxu0 0.0
    %58 = vmatprep.subr.mxu0 0.0
    %59 = vmatpush1.msra.mxu0 0.0
    %60 = vmatprep.subr.mxu0 0.0
    %61 = vmatpush1.msra.mxu0 0.0
    %62 = vmatprep.subr.mxu0 0.0
    %63 = vmatpush1.msra.mxu0 0.0
    %64 = vmatprep.subr.mxu0 0.0
    %65 = vmatpush1.msra.mxu0 0.0
    %66 = vmatprep.subr.mxu0 0.0
    %67 = vmatpush1.msra.mxu0 0.0
    %68 = vmatprep.subr.mxu0 0.0
    %69 = vmatpush1.msra.mxu0 0.0
    %70 = vmatprep.subr.mxu0 0.0
    %71 = vmatpush1.msra.mxu0 0.0
    %72 = vmatprep.subr.mxu0 0.0
    %73 = vmatpush1.msra.mxu0 0.0
    %74 = vmatprep.subr.mxu0 0.0
    %75 = vmatpush1.msra.mxu0 0.0
    %76 = vmatprep.subr.mxu0 0.0
    %77 = vmatpush1.msra.mxu0 0.0
    %78 = vmatprep.subr.mxu0 0.0
    %79 = vmatpush1.msra.mxu0 0.0
    %80 = vmatprep.subr.mxu0 0.0
    %81 = vmatpush1.msra.mxu0 0.0
    %82 = vmatprep.subr.mxu0 0.0
    %83 = vmatpush1.msra.mxu0 0.0
    %84 = vmatprep.subr.mxu0 0.0
    %85 = vmatpush1.msra.mxu0 0.0
    %86 = vmatprep.subr.mxu0 0.0
    %87 = vmatpush1.msra.mxu0 0.0
    %88 = vmatprep.mubr.f32.mxu0 0.0
    %89 = vmatmul.mubr.f32.gmra.mrb[0].mxu0 %v22
    %v90 = vpop.f32.mrb[0].mxu0
    %v91 = vadd.f32 %v19, %v90
    %v92 = vpop.f32.mrb[0].mxu0
    %93 = vdwg.mxu0
    %v94 = vmax.f32 %v91, 0.0
    %v95 = vld [vmem:[%s1 + $0x18] sm:$0xff]
    %v96 = vld [vmem:[%s1 + $0x20] sm:$0xff]
    %v97 = vld [vmem:[%s1 + $0x28] sm:$0xff]
    %v98 = vld [vmem:[%s1 + $0x30] sm:$0xff]
    %v99 = vld [vmem:[%s1 + $0x38] sm:$0x1]
    %v100 = vlaneseq
    %v101 = vshrl.u32 %v100, 7
    %v102 = vsub.s32 0, %v101
    %v103 = vrot.slane %v99, %v102
    %vm104 = vcmask 261120
    %v106 = vsel %vm104, %v94, 0
    %108 = vmatprep.subr.mxu0 0.0
    %109 = vmatpush1.msra.mxu0 %v95
    %110 = vmatprep.subr.mxu0 0.0
    %111 = vmatpush1.msra.mxu0 %v96
    %112 = vmatprep.subr.mxu0 0.0
    %113 = vmatpush1.msra.mxu0 %v97
    %114 = vmatprep.subr.mxu0 0.0
    %115 = vmatpush1.msra.mxu0 %v98
    %116 = vmatprep.subr.mxu0 0.0
    %117 = vmatpush1.msra.mxu0 0.0
    %118 = vmatprep.subr.mxu0 0.0
    %119 = vmatpush1.msra.mxu0 0.0
    %120 = vmatprep.subr.mxu0 0.0
    %121 = vmatpush1.msra.mxu0 0.0
    %122 = vmatprep.subr.mxu0 0.0
    %123 = vmatpush1.msra.mxu0 0.0
    %124 = vmatprep.subr.mxu0 0.0
    %125 = vmatpush1.msra.mxu0 0.0
    %126 = vmatprep.subr.mxu0 0.0
    %127 = vmatpush1.msra.mxu0 0.0
    %128 = vmatprep.subr.mxu0 0.0
    %129 = vmatpush1.msra.mxu0 0.0
    %130 = vmatprep.subr.mxu0 0.0
    %131 = vmatpush1.msra.mxu0 0.0
    %132 = vmatprep.subr.mxu0 0.0
    %133 = vmatpush1.msra.mxu0 0.0
    %134 = vmatprep.subr.mxu0 0.0
    %135 = vmatpush1.msra.mxu0 0.0
    %136 = vmatprep.subr.mxu0 0.0
    %137 = vmatpush1.msra.mxu0 0.0
    %138 = vmatprep.subr.mxu0 0.0
    %139 = vmatpush1.msra.mxu0 0.0
    %140 = vmatprep.subr.mxu0 0.0
    %141 = vmatpush1.msra.mxu0 0.0
    %142 = vmatprep.subr.mxu0 0.0
    %143 = vmatpush1.msra.mxu0 0.0
    %144 = vmatprep.subr.mxu0 0.0
    %145 = vmatpush1.msra.mxu0 0.0
    %146 = vmatprep.subr.mxu0 0.0
    %147 = vmatpush1.msra.mxu0 0.0
    %148 = vmatprep.subr.mxu0 0.0
    %149 = vmatpush1.msra.mxu0 0.0
    %150 = vmatprep.subr.mxu0 0.0
    %151 = vmatpush1.msra.mxu0 0.0
    %152 = vmatprep.subr.mxu0 0.0
    %153 = vmatpush1.msra.mxu0 0.0
    %154 = vmatprep.subr.mxu0 0.0
    %155 = vmatpush1.msra.mxu0 0.0
    %156 = vmatprep.subr.mxu0 0.0
    %157 = vmatpush1.msra.mxu0 0.0
    %158 = vmatprep.subr.mxu0 0.0
    %159 = vmatpush1.msra.mxu0 0.0
    %160 = vmatprep.subr.mxu0 0.0
    %161 = vmatpush1.msra.mxu0 0.0
    %162 = vmatprep.subr.mxu0 0.0
    %163 = vmatpush1.msra.mxu0 0.0
    %164 = vmatprep.subr.mxu0 0.0
    %165 = vmatpush1.msra.mxu0 0.0
    %166 = vmatprep.subr.mxu0 0.0
    %167 = vmatpush1.msra.mxu0 0.0
    %168 = vmatprep.subr.mxu0 0.0
    %169 = vmatpush1.msra.mxu0 0.0
    %170 = vmatprep.subr.mxu0 0.0
    %171 = vmatpush1.msra.mxu0 0.0
    %172 = vmatprep.mubr.f32.mxu0 0.0
    %173 = vmatmul.mubr.f32.gmra.mrb[0].mxu0 %v106
    %v174 = vpop.f32.mrb[0].mxu0
    %v175 = vadd.f32 %v103, %v174
    %v176 = vpop.f32.mrb[0].mxu0
    %177 = vdwg.mxu0
    %v178 = vmax.f32 %v175, 0.0
    %v179 = vld [vmem:[%s1 + $0x40] sm:$0xff]
    %v180 = vld [vmem:[%s1 + $0x48] sm:$0xff]
    %v181 = vld [vmem:[%s1 + $0x50] sm:$0xff]
    %v182 = vld [vmem:[%s1 + $0x58] sm:$0xff]
    %v183 = vld [vmem:[%s1 + $0x60] sm:$0x1]
    %v184 = vlaneseq
    %v185 = vshrl.u32 %v184, 7
    %v186 = vsub.s32 0, %v185
    %v187 = vrot.slane %v183, %v186
    %v189 = vsel %vm104, %v178, 0
    %191 = vmatprep.subr.mxu0 0.0
    %192 = vmatpush1.msra.mxu0 %v179
    %193 = vmatprep.subr.mxu0 0.0
    %194 = vmatpush1.msra.mxu0 %v180
    %195 = vmatprep.subr.mxu0 0.0
    %196 = vmatpush1.msra.mxu0 %v181
    %197 = vmatprep.subr.mxu0 0.0
    %198 = vmatpush1.msra.mxu0 %v182
    %199 = vmatprep.subr.mxu0 0.0
    %200 = vmatpush1.msra.mxu0 0.0
    %201 = vmatprep.subr.mxu0 0.0
    %202 = vmatpush1.msra.mxu0 0.0
    %203 = vmatprep.subr.mxu0 0.0
    %204 = vmatpush1.msra.mxu0 0.0
    %205 = vmatprep.subr.mxu0 0.0
    %206 = vmatpush1.msra.mxu0 0.0
    %207 = vmatprep.subr.mxu0 0.0
    %208 = vmatpush1.msra.mxu0 0.0
    %209 = vmatprep.subr.mxu0 0.0
    %210 = vmatpush1.msra.mxu0 0.0
    %211 = vmatprep.subr.mxu0 0.0
    %212 = vmatpush1.msra.mxu0 0.0
    %213 = vmatprep.subr.mxu0 0.0
    %214 = vmatpush1.msra.mxu0 0.0
    %215 = vmatprep.subr.mxu0 0.0
    %216 = vmatpush1.msra.mxu0 0.0
    %217 = vmatprep.subr.mxu0 0.0
    %218 = vmatpush1.msra.mxu0 0.0
    %219 = vmatprep.subr.mxu0 0.0
    %220 = vmatpush1.msra.mxu0 0.0
    %221 = vmatprep.subr.mxu0 0.0
    %222 = vmatpush1.msra.mxu0 0.0
    %223 = vmatprep.subr.mxu0 0.0
    %224 = vmatpush1.msra.mxu0 0.0
    %225 = vmatprep.subr.mxu0 0.0
    %226 = vmatpush1.msra.mxu0 0.0
    %227 = vmatprep.subr.mxu0 0.0
    %228 = vmatpush1.msra.mxu0 0.0
    %229 = vmatprep.subr.mxu0 0.0
    %230 = vmatpush1.msra.mxu0 0.0
    %231 = vmatprep.subr.mxu0 0.0
    %232 = vmatpush1.msra.mxu0 0.0
    %233 = vmatprep.subr.mxu0 0.0
    %234 = vmatpush1.msra.mxu0 0.0
    %235 = vmatprep.subr.mxu0 0.0
    %236 = vmatpush1.msra.mxu0 0.0
    %237 = vmatprep.subr.mxu0 0.0
    %238 = vmatpush1.msra.mxu0 0.0
    %239 = vmatprep.subr.mxu0 0.0
    %240 = vmatpush1.msra.mxu0 0.0
    %241 = vmatprep.subr.mxu0 0.0
    %242 = vmatpush1.msra.mxu0 0.0
    %243 = vmatprep.subr.mxu0 0.0
    %244 = vmatpush1.msra.mxu0 0.0
    %245 = vmatprep.subr.mxu0 0.0
    %246 = vmatpush1.msra.mxu0 0.0
    %247 = vmatprep.subr.mxu0 0.0
    %248 = vmatpush1.msra.mxu0 0.0
    %249 = vmatprep.subr.mxu0 0.0
    %250 = vmatpush1.msra.mxu0 0.0
    %251 = vmatprep.subr.mxu0 0.0
    %252 = vmatpush1.msra.mxu0 0.0
    %253 = vmatprep.subr.mxu0 0.0
    %254 = vmatpush1.msra.mxu0 0.0
    %255 = vmatprep.mubr.f32.mxu0 0.0
    %256 = vmatmul.mubr.f32.gmra.mrb[0].mxu0 %v189
    %v257 = vpop.f32.mrb[0].mxu0
    %v258 = vadd.f32 %v187, %v257
    %v259 = vpop.f32.mrb[0].mxu0
    %260 = vdwg.mxu0
    %v261 = vtanh.pop %v258
    %vm262 = vcmask 64512
    %263 = vst.msk [vmem:[#allocation2] sm:$0xff] %vm262, %v261
    // Predicated region
    $region10: #{tpu_custom_call.1} parent=1 // pred_check
      _
    $region11: #{tpu_custom_call.1} parent=1 // pred_check_branch
      %265 = sbr.rel (0) target = $region13
    $region12: #{tpu_custom_call.1} parent=1 // pred_region
      %s267 = ssub.s32 128, 32
      %268 = vsyncadd [#allocation3], %s267
      %s269 = sshll.u32 [#allocation2], 4
      %s270 = int_to_ptr.vmem [resolvable:$true] %s269
      %275 = dma.vmem_to_hbm [thread:$0]  %s270, 32, %s2, [#allocation3], 32, 32, 2
    $region13: #{tpu_custom_call.1} parent=1 // pred_fallthru
      _
    // Predicated region
    $region14: #{tpu_custom_call.1} parent=1 // pred_check
      _
    $region15: #{tpu_custom_call.1} parent=1 // pred_check_branch
      %277 = sbr.rel (0) target = $region17
    $region16: #{tpu_custom_call.1} parent=1 // pred_region
      %278 = dma.done [#allocation3], 128
    $region17: #{tpu_custom_call.1} parent=1 // pred_fallthru
      _
    %279 = vsyncpa [#allocation3], 1

</llo_original>
